<compile_context>
chip_gen: v7x
topology: tpu7x:2x2x1
jax: 0.10.0
libtpu: 0.0.40
codegen_flags: <defaults>
</compile_context>

<pallas_src>
import functools

import jax
import jax.numpy as jnp
from jax.experimental import pallas as pl
from jax.experimental.pallas import tpu as pltpu


def _round_up(x, m):
    return (x + m - 1) // m * m


def _stable_sigmoid(z):
    e = jnp.exp(-jnp.abs(z))
    return jnp.where(z >= 0.0, 1.0 / (1.0 + e), e / (1.0 + e))


# ----------------------------------------------------------------------------
# Fused CALayer kernel: global-avg-pool + fc1 + ReLU + fc2 + sigmoid
# ----------------------------------------------------------------------------

def _ca_kernel(x_ref, wpk_ref, o_ref, acc_ref, *,
               inv_hw, hw, ts, bt, c, cr, cp, needs_mask):
    """Per grid step: one (Bt, C, ts) spatial slab of Bt batch elements.

    The spatial sum is carried in a (Bt, C, 1) f32 VMEM scratch across the
    reduction axis; the tiny C -> C/r -> C FC chain runs once in the last-tile
    epilogue on the VPU (broadcast-multiply + small reductions, no MXU).
    """
    t = pl.program_id(1)
    nt = pl.num_programs(1)

    @pl.when(t == 0)
    def _():
        acc_ref[...] = jnp.zeros_like(acc_ref)

    if needs_mask:
        # Ragged last tile: Pallas does not zero out-of-bounds lanes, so mask
        # BEFORE the partial sum. Steady-state tiles skip the mask entirely.
        @pl.when(t < nt - 1)
        def _():
            acc_ref[...] += jnp.sum(x_ref[...].astype(jnp.float32),
                                    axis=-1, keepdims=True)

        @pl.when(t == nt - 1)
        def _():
            lane = jax.lax.broadcasted_iota(jnp.int32, (1, 1, ts), 2)
            valid = (t * ts + lane) < hw
            xt = jnp.where(valid, x_ref[...].astype(jnp.float32), 0.0)
            acc_ref[...] += jnp.sum(xt, axis=-1, keepdims=True)
    else:
        acc_ref[...] += jnp.sum(x_ref[...].astype(jnp.float32),
                                axis=-1, keepdims=True)

    @pl.when(t == nt - 1)
    def _():
        # Unpack the constants slab (static, sublane-aligned row offsets).
        w1t = wpk_ref[0:c, 0:cr]                       # (C, Cr)  == w1.T
        w2 = wpk_ref[cp:cp + c, 0:cr]                  # (C, Cr)
        b2 = wpk_ref[2 * cp:2 * cp + c, 0:1]           # (C, 1)
        b1 = wpk_ref[3 * cp:3 * cp + 1, 0:cr]          # (1, Cr)
        for i in range(bt):                            # tiny, unrolled
            mean = acc_ref[i] * inv_hw                                 # (C, 1)
            # fc1: y1[0, j] = sum_c w1[j, c] * mean[c]
            y1 = jnp.sum(w1t * mean, axis=0, keepdims=True)            # (1, Cr)
            y1 = jnp.maximum(y1 + b1, 0.0)                             # ReLU
            # fc2: y2[c, 0] = sum_j w2[c, j] * y1[j]
            y2 = jnp.sum(w2 * y1, axis=-1, keepdims=True) + b2         # (C, 1)
            o_ref[i] = _stable_sigmoid(y2)


def ca_layer(x, w1, b1, w2, b2, *, spatial_tile=8192):
    """CALayer forward.

    x : (B, C, H, W), NCHW (torch layout); any float dtype (upcast per tile)
    w1: (Cr, C)  -- torch Conv2d(C, Cr, 1) weight, squeezed
    b1: (Cr,)
    w2: (C, Cr)  -- torch Conv2d(Cr, C, 1) weight, squeezed
    b2: (C,)
    returns: (B, C, 1, 1) float32 channel-attention weights (module returns y)
    """
    B, C, H, W = x.shape
    Cr = w1.shape[0]
    HW = H * W
    itemsize = jnp.dtype(x.dtype).itemsize

    # Contiguous reshape only; no dtype cast (avoids an extra HBM pass).
    x2 = x.reshape(B, C, HW)

    # --- spatial tile: whole HW if it fits, else a large multiple of 128,
    #     capped so the double-buffered input slab stays within budget.
    vmem_budget = 16 * 1024 * 1024
    ts_vmem_cap = max(128, (vmem_budget // (2 * C * itemsize)) // 128 * 128)
    max_ts = min(_round_up(max(spatial_tile, 128), 128), ts_vmem_cap)
    if HW <= max_ts:
        ts, nt = HW, 1
    else:
        ts = max_ts
        nt = (HW + ts - 1) // ts
    needs_mask = (nt > 1) and (HW % ts != 0)

    # --- batch block: pack several batch elements per step (amortizes the
    #     ~0.35us per-step overhead on small-HW shapes); must divide B.
    bt_cap = max(1, vmem_budget // (2 * C * ts * itemsize))
    Bt = 1
    for d in range(min(B, bt_cap, 8), 0, -1):
        if B % d == 0:
            Bt = d
            break

    # --- pack w1^T / w2 / b2 / b1 into one lane-padded constants slab.
    Cp = _round_up(C, 8)
    Lp = _round_up(max(Cr, 1), 128)
    wpk = jnp.zeros((4 * Cp, Lp), jnp.float32)
    wpk = wpk.at[0:C, 0:Cr].set(jnp.transpose(w1).astype(jnp.float32))
    wpk = wpk.at[Cp:Cp + C, 0:Cr].set(w2.astype(jnp.float32))
    wpk = wpk.at[2 * Cp:2 * Cp + C, 0:1].set(b2.reshape(C, 1).astype(jnp.float32))
    wpk = wpk.at[3 * Cp:3 * Cp + 1, 0:Cr].set(b1.reshape(1, Cr).astype(jnp.float32))

    kernel = functools.partial(
        _ca_kernel, inv_hw=1.0 / float(HW), hw=HW, ts=ts, bt=Bt,
        c=C, cr=Cr, cp=Cp, needs_mask=needs_mask)

    out = pl.pallas_call(
        kernel,
        out_shape=jax.ShapeDtypeStruct((B, C, 1), jnp.float32),
        grid_spec=pltpu.PrefetchScalarGridSpec(
            num_scalar_prefetch=0,
            grid=(B // Bt, nt),                              # (batch blocks, spatial tiles)
            in_specs=[
                pl.BlockSpec((Bt, C, ts), lambda b, t: (b, 0, t)),   # x slab
                pl.BlockSpec((4 * Cp, Lp), lambda b, t: (0, 0)),     # packed consts
            ],
            out_specs=pl.BlockSpec((Bt, C, 1), lambda b, t: (b, 0, 0)),
            scratch_shapes=[pltpu.VMEM((Bt, C, 1), jnp.float32)],    # pool acc
        ),
        compiler_params=pltpu.CompilerParams(
            dimension_semantics=("parallel", "arbitrary"),
            vmem_limit_bytes=32 * 1024 * 1024),
    )(x2, wpk)
    return out.reshape(B, C, 1, 1)


# ----------------------------------------------------------------------------
# Pure-JAX reference (mirrors the PyTorch module exactly)
# ----------------------------------------------------------------------------

def ca_layer_reference(x, w1, b1, w2, b2):
    y = jnp.mean(x.astype(jnp.float32), axis=(2, 3))       # (B, C)
    y = jax.nn.relu(y @ w1.T + b1[None, :])                 # (B, Cr)
    y = jax.nn.sigmoid(y @ w2.T + b2[None, :])              # (B, C)
    return y[:, :, None, None]                              # (B, C, 1, 1)


# ----------------------------------------------------------------------------
# Main
# ----------------------------------------------------------------------------

if __name__ == "__main__":
    key = jax.random.PRNGKey(0)
    kx, k1, k2, k3, k4 = jax.random.split(key, 5)

    # Module defaults: channel=64, reduction=16  ->  bottleneck Cr = 4.
    B, channel, H, W = 2, 64, 16, 16
    reduction = 16
    cr = max(1, channel // reduction)

    x = jax.random.normal(kx, (B, channel, H, W), jnp.float32)
    w1 = 0.05 * jax.random.normal(k1, (cr, channel), jnp.float32)
    b1 = 0.01 * jax.random.normal(k2, (cr,), jnp.float32)
    w2 = 0.05 * jax.random.normal(k3, (channel, cr), jnp.float32)
    b2 = 0.01 * jax.random.normal(k4, (channel,), jnp.float32)

    fwd = jax.jit(ca_layer)
    out = jax.block_until_ready(fwd(x, w1, b1, w2, b2))

    ref = ca_layer_reference(x, w1, b1, w2, b2)
    assert out.shape == (B, channel, 1, 1), out.shape
    assert bool(jnp.all(jnp.isfinite(out)))
    assert bool(jnp.allclose(out, ref, atol=1e-5, rtol=1e-5)), \
        float(jnp.max(jnp.abs(out - ref)))
    print("KERNEL_OK")
</pallas_src>

<mosaic_0001>
module attributes {stable_mosaic.version = 11 : i64} {
  func.func @_ca_kernel(%arg0: i32, %arg1: i32, %arg2: memref<2x64x256xf32, #tpu.memory_space<vmem>>, %arg3: memref<256x128xf32, #tpu.memory_space<vmem>>, %arg4: memref<2x64x1xf32, #tpu.memory_space<vmem>>, %arg5: memref<2x64x1xf32, #tpu.memory_space<vmem>>) attributes {dimension_semantics = [#tpu.dimension_semantics<parallel>, #tpu.dimension_semantics<arbitrary>], iteration_bounds = array<i64: 1, 1>, scalar_prefetch = 0 : i64, scratch_operands = 1 : i64, tpu.core_type = #tpu.core_type<tc>, window_params = [{transform_indices = @transform_0, window_bounds = array<i64: 2, 64, 256>}, {pipeline_mode = #tpu.pipeline_mode<synchronous>, transform_indices = @transform_1, window_bounds = array<i64: 256, 128>}, {transform_indices = @transform_2, window_bounds = array<i64: 2, 64, 1>}]} {
    %c0_i32 = arith.constant 0 : i32
    %0 = arith.cmpi eq, %arg1, %c0_i32 : i32
    %1 = arith.extui %0 : i1 to i32
    %c0_i32_0 = arith.constant 0 : i32
    %2 = arith.cmpi ne, %1, %c0_i32_0 : i32
    scf.if %2 {
      %cst_11 = arith.constant 0.000000e+00 : f32
      %12 = vector.broadcast %cst_11 : f32 to vector<2x64x1xf32>
      %c0_12 = arith.constant 0 : index
      %c0_13 = arith.constant 0 : index
      %c0_14 = arith.constant 0 : index
      %13 = vector.load %arg5[%c0_12, %c0_13, %c0_14] : memref<2x64x1xf32, #tpu.memory_space<vmem>>, vector<2x64x1xf32>
      tpu.vector_store %arg5[%c0_12, %c0_13, %c0_14], %12 {strides = array<i32>} : memref<2x64x1xf32, #tpu.memory_space<vmem>>, vector<2x64x1xf32>,
    } else {
    }
    %c0 = arith.constant 0 : index
    %c0_1 = arith.constant 0 : index
    %c0_2 = arith.constant 0 : index
    %3 = vector.load %arg5[%c0, %c0_1, %c0_2] : memref<2x64x1xf32, #tpu.memory_space<vmem>>, vector<2x64x1xf32>
    %c0_3 = arith.constant 0 : index
    %c0_4 = arith.constant 0 : index
    %c0_5 = arith.constant 0 : index
    %4 = vector.load %arg2[%c0_3, %c0_4, %c0_5] : memref<2x64x256xf32, #tpu.memory_space<vmem>>, vector<2x64x256xf32>
    %cst = arith.constant dense<0.000000e+00> : vector<2x64xf32>
    %5 = vector.multi_reduction <add>, %4, %cst [2] : vector<2x64x256xf32> to vector<2x64xf32>
    %6 = vector.shape_cast %5 : vector<2x64xf32> to vector<2x64x1xf32>
    %7 = arith.addf %3, %6 : vector<2x64x1xf32>
    %c0_6 = arith.constant 0 : index
    %c0_7 = arith.constant 0 : index
    %c0_8 = arith.constant 0 : index
    %8 = vector.load %arg5[%c0_6, %c0_7, %c0_8] : memref<2x64x1xf32, #tpu.memory_space<vmem>>, vector<2x64x1xf32>
    tpu.vector_store %arg5[%c0_6, %c0_7, %c0_8], %7 {strides = array<i32>} : memref<2x64x1xf32, #tpu.memory_space<vmem>>, vector<2x64x1xf32>,
    %c0_i32_9 = arith.constant 0 : i32
    %9 = arith.cmpi eq, %arg1, %c0_i32_9 : i32
    %10 = arith.extui %9 : i1 to i32
    %c0_i32_10 = arith.constant 0 : i32
    %11 = arith.cmpi ne, %10, %c0_i32_10 : i32
    scf.if %11 {
      %c0_11 = arith.constant 0 : index
      %c0_12 = arith.constant 0 : index
      %12 = vector.load %arg3[%c0_11, %c0_12] : memref<256x128xf32, #tpu.memory_space<vmem>>, vector<64x4xf32>
      %c64 = arith.constant 64 : index
      %c0_13 = arith.constant 0 : index
      %13 = vector.load %arg3[%c64, %c0_13] : memref<256x128xf32, #tpu.memory_space<vmem>>, vector<64x4xf32>
      %c128 = arith.constant 128 : index
      %c0_14 = arith.constant 0 : index
      %14 = vector.load %arg3[%c128, %c0_14] : memref<256x128xf32, #tpu.memory_space<vmem>>, vector<64x1xf32>
      %c192 = arith.constant 192 : index
      %c0_15 = arith.constant 0 : index
      %15 = vector.load %arg3[%c192, %c0_15] : memref<256x128xf32, #tpu.memory_space<vmem>>, vector<1x4xf32>
      %c0_16 = arith.constant 0 : index
      %c0_17 = arith.constant 0 : index
      %c0_18 = arith.constant 0 : index
      %16 = vector.load %arg5[%c0_16, %c0_17, %c0_18] : memref<2x64x1xf32, #tpu.memory_space<vmem>>, vector<1x64x1xf32>
      %17 = vector.shape_cast %16 : vector<1x64x1xf32> to vector<64x1xf32>
      %cst_19 = arith.constant 3.906250e-03 : f32
      %18 = vector.broadcast %cst_19 : f32 to vector<64x1xf32>
      %19 = arith.mulf %17, %18 : vector<64x1xf32>
      %20 = vector.broadcast %19 : vector<64x1xf32> to vector<64x4xf32>
      %21 = arith.mulf %12, %20 : vector<64x4xf32>
      %cst_20 = arith.constant dense<0.000000e+00> : vector<4xf32>
      %22 = vector.multi_reduction <add>, %21, %cst_20 [0] : vector<64x4xf32> to vector<4xf32>
      %23 = vector.shape_cast %22 : vector<4xf32> to vector<1x4xf32>
      %24 = arith.addf %23, %15 : vector<1x4xf32>
      %cst_21 = arith.constant 0.000000e+00 : f32
      %25 = vector.broadcast %cst_21 : f32 to vector<1x4xf32>
      %26 = arith.maximumf %24, %25 : vector<1x4xf32>
      %27 = vector.broadcast %26 : vector<1x4xf32> to vector<64x4xf32>
      %28 = arith.mulf %13, %27 : vector<64x4xf32>
      %cst_22 = arith.constant dense<0.000000e+00> : vector<64xf32>
      %29 = vector.multi_reduction <add>, %28, %cst_22 [1] : vector<64x4xf32> to vector<64xf32>
      %30 = vector.shape_cast %29 : vector<64xf32> to vector<64x1xf32>
      %31 = arith.addf %30, %14 : vector<64x1xf32>
      %32 = math.absf %31 : vector<64x1xf32>
      %cst_23 = arith.constant 0.000000e+00 : f32
      %33 = vector.broadcast %cst_23 : f32 to vector<64x1xf32>
      %34 = arith.subf %33, %32 : vector<64x1xf32>
      %35 = math.exp %34 : vector<64x1xf32>
      %cst_24 = arith.constant 0.000000e+00 : f32
      %36 = vector.broadcast %cst_24 : f32 to vector<64x1xf32>
      %37 = arith.cmpf oge, %31, %36 : vector<64x1xf32>
      %cst_25 = arith.constant 1.000000e+00 : f32
      %38 = vector.broadcast %cst_25 : f32 to vector<64x1xf32>
      %39 = arith.addf %38, %35 : vector<64x1xf32>
      %cst_26 = arith.constant 1.000000e+00 : f32
      %40 = vector.broadcast %cst_26 : f32 to vector<64x1xf32>
      %41 = arith.divf %40, %39 : vector<64x1xf32>
      %cst_27 = arith.constant 1.000000e+00 : f32
      %42 = vector.broadcast %cst_27 : f32 to vector<64x1xf32>
      %43 = arith.addf %42, %35 : vector<64x1xf32>
      %44 = arith.divf %35, %43 : vector<64x1xf32>
      %45 = arith.select %37, %41, %44 : vector<64x1xi1>, vector<64x1xf32>
      %c0_28 = arith.constant 0 : index
      %c0_29 = arith.constant 0 : index
      %c0_30 = arith.constant 0 : index
      %46 = vector.load %arg4[%c0_28, %c0_29, %c0_30] : memref<2x64x1xf32, #tpu.memory_space<vmem>>, vector<1x64x1xf32>
      %47 = vector.shape_cast %46 : vector<1x64x1xf32> to vector<64x1xf32>
      %48 = vector.shape_cast %45 : vector<64x1xf32> to vector<1x64x1xf32>
      tpu.vector_store %arg4[%c0_28, %c0_29, %c0_30], %48 {strides = array<i32>} : memref<2x64x1xf32, #tpu.memory_space<vmem>>, vector<1x64x1xf32>,
      %c1 = arith.constant 1 : index
      %c0_31 = arith.constant 0 : index
      %c0_32 = arith.constant 0 : index
      %49 = vector.load %arg5[%c1, %c0_31, %c0_32] : memref<2x64x1xf32, #tpu.memory_space<vmem>>, vector<1x64x1xf32>
      %50 = vector.shape_cast %49 : vector<1x64x1xf32> to vector<64x1xf32>
      %cst_33 = arith.constant 3.906250e-03 : f32
      %51 = vector.broadcast %cst_33 : f32 to vector<64x1xf32>
      %52 = arith.mulf %50, %51 : vector<64x1xf32>
      %53 = vector.broadcast %52 : vector<64x1xf32> to vector<64x4xf32>
      %54 = arith.mulf %12, %53 : vector<64x4xf32>
      %cst_34 = arith.constant dense<0.000000e+00> : vector<4xf32>
      %55 = vector.multi_reduction <add>, %54, %cst_34 [0] : vector<64x4xf32> to vector<4xf32>
      %56 = vector.shape_cast %55 : vector<4xf32> to vector<1x4xf32>
      %57 = arith.addf %56, %15 : vector<1x4xf32>
      %cst_35 = arith.constant 0.000000e+00 : f32
      %58 = vector.broadcast %cst_35 : f32 to vector<1x4xf32>
      %59 = arith.maximumf %57, %58 : vector<1x4xf32>
      %60 = vector.broadcast %59 : vector<1x4xf32> to vector<64x4xf32>
      %61 = arith.mulf %13, %60 : vector<64x4xf32>
      %cst_36 = arith.constant dense<0.000000e+00> : vector<64xf32>
      %62 = vector.multi_reduction <add>, %61, %cst_36 [1] : vector<64x4xf32> to vector<64xf32>
      %63 = vector.shape_cast %62 : vector<64xf32> to vector<64x1xf32>
      %64 = arith.addf %63, %14 : vector<64x1xf32>
      %65 = math.absf %64 : vector<64x1xf32>
      %cst_37 = arith.constant 0.000000e+00 : f32
      %66 = vector.broadcast %cst_37 : f32 to vector<64x1xf32>
      %67 = arith.subf %66, %65 : vector<64x1xf32>
      %68 = math.exp %67 : vector<64x1xf32>
      %cst_38 = arith.constant 0.000000e+00 : f32
      %69 = vector.broadcast %cst_38 : f32 to vector<64x1xf32>
      %70 = arith.cmpf oge, %64, %69 : vector<64x1xf32>
      %cst_39 = arith.constant 1.000000e+00 : f32
      %71 = vector.broadcast %cst_39 : f32 to vector<64x1xf32>
      %72 = arith.addf %71, %68 : vector<64x1xf32>
      %cst_40 = arith.constant 1.000000e+00 : f32
      %73 = vector.broadcast %cst_40 : f32 to vector<64x1xf32>
      %74 = arith.divf %73, %72 : vector<64x1xf32>
      %cst_41 = arith.constant 1.000000e+00 : f32
      %75 = vector.broadcast %cst_41 : f32 to vector<64x1xf32>
      %76 = arith.addf %75, %68 : vector<64x1xf32>
      %77 = arith.divf %68, %76 : vector<64x1xf32>
      %78 = arith.select %70, %74, %77 : vector<64x1xi1>, vector<64x1xf32>
      %c1_42 = arith.constant 1 : index
      %c0_43 = arith.constant 0 : index
      %c0_44 = arith.constant 0 : index
      %79 = vector.load %arg4[%c1_42, %c0_43, %c0_44] : memref<2x64x1xf32, #tpu.memory_space<vmem>>, vector<1x64x1xf32>
      %80 = vector.shape_cast %79 : vector<1x64x1xf32> to vector<64x1xf32>
      %81 = vector.shape_cast %78 : vector<64x1xf32> to vector<1x64x1xf32>
      tpu.vector_store %arg4[%c1_42, %c0_43, %c0_44], %81 {strides = array<i32>} : memref<2x64x1xf32, #tpu.memory_space<vmem>>, vector<1x64x1xf32>,
    } else {
    }
    return
  }
  func.func @transform_0(%arg0: i32, %arg1: i32) -> (i32, i32, i32) {
    %c0_i32 = arith.constant 0 : i32
    %c0_i32_0 = arith.constant 0 : i32
    return %arg0, %c0_i32, %arg1 : i32, i32, i32
  }
  func.func @transform_1(%arg0: i32, %arg1: i32) -> (i32, i32) {
    %c0_i32 = arith.constant 0 : i32
    %c0_i32_0 = arith.constant 0 : i32
    %c0_i32_1 = arith.constant 0 : i32
    return %c0_i32, %c0_i32_0 : i32, i32
  }
  func.func @transform_2(%arg0: i32, %arg1: i32) -> (i32, i32, i32) {
    %c0_i32 = arith.constant 0 : i32
    %c0_i32_0 = arith.constant 0 : i32
    %c0_i32_1 = arith.constant 0 : i32
    return %arg0, %c0_i32, %c0_i32_0 : i32, i32, i32
  }
}

</mosaic_0001>

<llo_original>
// kernel: ca_layer.1
$region0: #{ca_layer.1}
  #allocation0 [shape = 'u32[]', space=smem, size = 0x4, offset = 0x4, fixed_abs, tag = 'smem constant byte address 0x4 - core index']
  #allocation1 [shape = 'u32[144,128]{1,0:T(1,128)}', space=vmem, size = 0x12000, scoped, tag = 'internal scratch']
  #allocation2 [shape = 'f32[2,64,1]{2,1,0:T(8,128)}', space=vmem, size = 0x10000, scoped, tag = 'scratch operand']
  %s0 = inlined_call_operand.vmem [shape: f32[2,64,256], index: 0, kind: input, shape index: {}]
  %s1 = inlined_call_operand.vmem [shape: f32[256,128], index: 1, kind: input, shape index: {}]
  %s2 = inlined_call_operand.vmem [shape: f32[2,64,1], index: 2, kind: output, shape index: {}]
  %s3 = sld [smem:[#allocation0]]
  $region26: #{ca_layer.1} parent=0
    _
  %s5 = ssub.s32 1, %s3
  %s6 = scalar_select 0, %s5, %s3
  // Predicated region
  $region2: #{ca_layer.1} parent=0 // pred_check
    _
  $region3: #{ca_layer.1} parent=0 // pred_check_branch
    %8 = sbr.rel (0) target = $region5
  $region4: #{ca_layer.1} parent=0 // pred_region
    _
  $region5: #{ca_layer.1} parent=0 // pred_fallthru
    _
  // Predicated region
  $region6: #{ca_layer.1} parent=0 // pred_check
    _
  $region7: #{ca_layer.1} parent=0 // pred_check_branch
    %10 = sbr.rel (0) target = $region9
  $region8: #{ca_layer.1} parent=0 // pred_region
    _
  $region9: #{ca_layer.1} parent=0 // pred_fallthru
    _
  %p11 = scmp.eq.s32.totalorder 0, 0
  // Predicated region
  $region10: #{ca_layer.1} parent=0 // pred_check
    %p12 = pneg %p11
  $region11: #{ca_layer.1} parent=0 // pred_check_branch
    %14 = sbr.rel (%p12) target = $region13
  $region12: #{ca_layer.1} parent=0 // pred_region
    %vm15 = vcmask 7168
    %16 = vst.msk [vmem:[#allocation2] sm:$0xff] %vm15, 0.0
    %17 = vst.msk [vmem:[#allocation2 + $0x8] sm:$0xff] %vm15, 0.0
    %18 = vst.msk [vmem:[#allocation2 + $0x10] sm:$0xff] %vm15, 0.0
    %19 = vst.msk [vmem:[#allocation2 + $0x18] sm:$0xff] %vm15, 0.0
    %20 = vst.msk [vmem:[#allocation2 + $0x20] sm:$0xff] %vm15, 0.0
    %21 = vst.msk [vmem:[#allocation2 + $0x28] sm:$0xff] %vm15, 0.0
    %22 = vst.msk [vmem:[#allocation2 + $0x30] sm:$0xff] %vm15, 0.0
    %23 = vst.msk [vmem:[#allocation2 + $0x38] sm:$0xff] %vm15, 0.0
    %24 = vst.msk [vmem:[#allocation2 + $0x40] sm:$0xff] %vm15, 0.0
    %25 = vst.msk [vmem:[#allocation2 + $0x48] sm:$0xff] %vm15, 0.0
    %26 = vst.msk [vmem:[#allocation2 + $0x50] sm:$0xff] %vm15, 0.0
    %27 = vst.msk [vmem:[#allocation2 + $0x58] sm:$0xff] %vm15, 0.0
    %28 = vst.msk [vmem:[#allocation2 + $0x60] sm:$0xff] %vm15, 0.0
    %29 = vst.msk [vmem:[#allocation2 + $0x68] sm:$0xff] %vm15, 0.0
    %30 = vst.msk [vmem:[#allocation2 + $0x70] sm:$0xff] %vm15, 0.0
    %31 = vst.msk [vmem:[#allocation2 + $0x78] sm:$0xff] %vm15, 0.0
  $region13: #{ca_layer.1} parent=0 // pred_fallthru
    _
  %v32 = vld [vmem:[#allocation2] sm:$0xff]
  %v33 = vld [vmem:[#allocation2 + $0x8] sm:$0xff]
  %v34 = vld [vmem:[#allocation2 + $0x10] sm:$0xff]
  %v35 = vld [vmem:[#allocation2 + $0x18] sm:$0xff]
  %v36 = vld [vmem:[#allocation2 + $0x20] sm:$0xff]
  %v37 = vld [vmem:[#allocation2 + $0x28] sm:$0xff]
  %v38 = vld [vmem:[#allocation2 + $0x30] sm:$0xff]
  %v39 = vld [vmem:[#allocation2 + $0x38] sm:$0xff]
  %v40 = vld [vmem:[#allocation2 + $0x40] sm:$0xff]
  %v41 = vld [vmem:[#allocation2 + $0x48] sm:$0xff]
  %v42 = vld [vmem:[#allocation2 + $0x50] sm:$0xff]
  %v43 = vld [vmem:[#allocation2 + $0x58] sm:$0xff]
  %v44 = vld [vmem:[#allocation2 + $0x60] sm:$0xff]
  %v45 = vld [vmem:[#allocation2 + $0x68] sm:$0xff]
  %v46 = vld [vmem:[#allocation2 + $0x70] sm:$0xff]
  %v47 = vld [vmem:[#allocation2 + $0x78] sm:$0xff]
  %v48 = vld [vmem:[%s0] sm:$0xff]
  %v49 = vld [vmem:[%s0 + $0x8] sm:$0xff]
  %v50 = vld [vmem:[%s0 + $0x10] sm:$0xff]
  %v51 = vld [vmem:[%s0 + $0x18] sm:$0xff]
  %v52 = vld [vmem:[%s0 + $0x20] sm:$0xff]
  %v53 = vld [vmem:[%s0 + $0x28] sm:$0xff]
  %v54 = vld [vmem:[%s0 + $0x30] sm:$0xff]
  %v55 = vld [vmem:[%s0 + $0x38] sm:$0xff]
  %v56 = vld [vmem:[%s0 + $0x40] sm:$0xff]
  %v57 = vld [vmem:[%s0 + $0x48] sm:$0xff]
  %v58 = vld [vmem:[%s0 + $0x50] sm:$0xff]
  %v59 = vld [vmem:[%s0 + $0x58] sm:$0xff]
  %v60 = vld [vmem:[%s0 + $0x60] sm:$0xff]
  %v61 = vld [vmem:[%s0 + $0x68] sm:$0xff]
  %v62 = vld [vmem:[%s0 + $0x70] sm:$0xff]
  %v63 = vld [vmem:[%s0 + $0x78] sm:$0xff]
  %v64 = vld [vmem:[%s0 + $0x80] sm:$0xff]
  %v65 = vld [vmem:[%s0 + $0x88] sm:$0xff]
  %v66 = vld [vmem:[%s0 + $0x90] sm:$0xff]
  %v67 = vld [vmem:[%s0 + $0x98] sm:$0xff]
  %v68 = vld [vmem:[%s0 + $0xa0] sm:$0xff]
  %v69 = vld [vmem:[%s0 + $0xa8] sm:$0xff]
  %v70 = vld [vmem:[%s0 + $0xb0] sm:$0xff]
  %v71 = vld [vmem:[%s0 + $0xb8] sm:$0xff]
  %v72 = vld [vmem:[%s0 + $0xc0] sm:$0xff]
  %v73 = vld [vmem:[%s0 + $0xc8] sm:$0xff]
  %v74 = vld [vmem:[%s0 + $0xd0] sm:$0xff]
  %v75 = vld [vmem:[%s0 + $0xd8] sm:$0xff]
  %v76 = vld [vmem:[%s0 + $0xe0] sm:$0xff]
  %v77 = vld [vmem:[%s0 + $0xe8] sm:$0xff]
  %v78 = vld [vmem:[%s0 + $0xf0] sm:$0xff]
  %v79 = vld [vmem:[%s0 + $0xf8] sm:$0xff]
  %v80 = vadd.f32 %v48, %v49
  %81 = vadd.xlane.f32.xlu0 %v80
  %v82 = vpop.xlane.xlu0 %81
  %v83 = vadd.f32 %v50, %v51
  %84 = vadd.xlane.f32.xlu0 %v83
  %v85 = vpop.xlane.xlu0 %84
  %v86 = vadd.f32 %v52, %v53
  %87 = vadd.xlane.f32.xlu0 %v86
  %v88 = vpop.xlane.xlu0 %87
  %v89 = vadd.f32 %v54, %v55
  %90 = vadd.xlane.f32.xlu0 %v89
  %v91 = vpop.xlane.xlu0 %90
  %v92 = vadd.f32 %v56, %v57
  %93 = vadd.xlane.f32.xlu0 %v92
  %v94 = vpop.xlane.xlu0 %93
  %v95 = vadd.f32 %v58, %v59
  %96 = vadd.xlane.f32.xlu0 %v95
  %v97 = vpop.xlane.xlu0 %96
  %v98 = vadd.f32 %v60, %v61
  %99 = vadd.xlane.f32.xlu0 %v98
  %v100 = vpop.xlane.xlu0 %99
  %v101 = vadd.f32 %v62, %v63
  %102 = vadd.xlane.f32.xlu0 %v101
  %v103 = vpop.xlane.xlu0 %102
  %v104 = vadd.f32 %v64, %v65
  %105 = vadd.xlane.f32.xlu0 %v104
  %v106 = vpop.xlane.xlu0 %105
  %v107 = vadd.f32 %v66, %v67
  %108 = vadd.xlane.f32.xlu0 %v107
  %v109 = vpop.xlane.xlu0 %108
  %v110 = vadd.f32 %v68, %v69
  %111 = vadd.xlane.f32.xlu0 %v110
  %v112 = vpop.xlane.xlu0 %111
  %v113 = vadd.f32 %v70, %v71
  %114 = vadd.xlane.f32.xlu0 %v113
  %v115 = vpop.xlane.xlu0 %114
  %v116 = vadd.f32 %v72, %v73
  %117 = vadd.xlane.f32.xlu0 %v116
  %v118 = vpop.xlane.xlu0 %117
  %v119 = vadd.f32 %v74, %v75
  %120 = vadd.xlane.f32.xlu0 %v119
  %v121 = vpop.xlane.xlu0 %120
  %v122 = vadd.f32 %v76, %v77
  %123 = vadd.xlane.f32.xlu0 %v122
  %v124 = vpop.xlane.xlu0 %123
  %v125 = vadd.f32 %v78, %v79
  %126 = vadd.xlane.f32.xlu0 %v125
  %v127 = vpop.xlane.xlu0 %126
  %v128 = vadd.f32 %v32, %v82
  %v129 = vadd.f32 %v33, %v85
  %v130 = vadd.f32 %v34, %v88
  %v131 = vadd.f32 %v35, %v91
  %v132 = vadd.f32 %v36, %v94
  %v133 = vadd.f32 %v37, %v97
  %v134 = vadd.f32 %v38, %v100
  %v135 = vadd.f32 %v39, %v103
  %v136 = vadd.f32 %v40, %v106
  %v137 = vadd.f32 %v41, %v109
  %v138 = vadd.f32 %v42, %v112
  %v139 = vadd.f32 %v43, %v115
  %v140 = vadd.f32 %v44, %v118
  %v141 = vadd.f32 %v45, %v121
  %v142 = vadd.f32 %v46, %v124
  %v143 = vadd.f32 %v47, %v127
  %vm144 = vcmask 7168
  %145 = vst.msk [vmem:[#allocation2] sm:$0xff] %vm144, %v128
  %146 = vst.msk [vmem:[#allocation2 + $0x8] sm:$0xff] %vm144, %v129
  %147 = vst.msk [vmem:[#allocation2 + $0x10] sm:$0xff] %vm144, %v130
  %148 = vst.msk [vmem:[#allocation2 + $0x18] sm:$0xff] %vm144, %v131
  %149 = vst.msk [vmem:[#allocation2 + $0x20] sm:$0xff] %vm144, %v132
  %150 = vst.msk [vmem:[#allocation2 + $0x28] sm:$0xff] %vm144, %v133
  %151 = vst.msk [vmem:[#allocation2 + $0x30] sm:$0xff] %vm144, %v134
  %152 = vst.msk [vmem:[#allocation2 + $0x38] sm:$0xff] %vm144, %v135
  %153 = vst.msk [vmem:[#allocation2 + $0x40] sm:$0xff] %vm144, %v136
  %154 = vst.msk [vmem:[#allocation2 + $0x48] sm:$0xff] %vm144, %v137
  %155 = vst.msk [vmem:[#allocation2 + $0x50] sm:$0xff] %vm144, %v138
  %156 = vst.msk [vmem:[#allocation2 + $0x58] sm:$0xff] %vm144, %v139
  %157 = vst.msk [vmem:[#allocation2 + $0x60] sm:$0xff] %vm144, %v140
  %158 = vst.msk [vmem:[#allocation2 + $0x68] sm:$0xff] %vm144, %v141
  %159 = vst.msk [vmem:[#allocation2 + $0x70] sm:$0xff] %vm144, %v142
  %160 = vst.msk [vmem:[#allocation2 + $0x78] sm:$0xff] %vm144, %v143
  // Predicated region
  $region14: #{ca_layer.1} parent=0 // pred_check
    %p161 = pneg %p11
  $region15: #{ca_layer.1} parent=0 // pred_check_branch
    %163 = sbr.rel (%p161) target = $region17
  $region16: #{ca_layer.1} parent=0 // pred_region
    %v164 = vld [vmem:[%s1] sm:$0xff]
    %v165 = vld [vmem:[%s1 + $0x8] sm:$0xff]
    %v166 = vld [vmem:[%s1 + $0x10] sm:$0xff]
    %v167 = vld [vmem:[%s1 + $0x18] sm:$0xff]
    %v168 = vld [vmem:[%s1 + $0x20] sm:$0xff]
    %v169 = vld [vmem:[%s1 + $0x28] sm:$0xff]
    %v170 = vld [vmem:[%s1 + $0x30] sm:$0xff]
    %v171 = vld [vmem:[%s1 + $0x38] sm:$0xff]
    %v172 = vld [vmem:[%s1 + $0x40] sm:$0xff]
    %v173 = vld [vmem:[%s1 + $0x48] sm:$0xff]
    %v174 = vld [vmem:[%s1 + $0x50] sm:$0xff]
    %v175 = vld [vmem:[%s1 + $0x58] sm:$0xff]
    %v176 = vld [vmem:[%s1 + $0x60] sm:$0xff]
    %v177 = vld [vmem:[%s1 + $0x68] sm:$0xff]
    %v178 = vld [vmem:[%s1 + $0x70] sm:$0xff]
    %v179 = vld [vmem:[%s1 + $0x78] sm:$0xff]
    %v180 = vld [vmem:[%s1 + $0x80] sm:$0xff]
    %v181 = vld [vmem:[%s1 + $0x88] sm:$0xff]
    %v182 = vld [vmem:[%s1 + $0x90] sm:$0xff]
    %v183 = vld [vmem:[%s1 + $0x98] sm:$0xff]
    %v184 = vld [vmem:[%s1 + $0xa0] sm:$0xff]
    %v185 = vld [vmem:[%s1 + $0xa8] sm:$0xff]
    %v186 = vld [vmem:[%s1 + $0xb0] sm:$0xff]
    %v187 = vld [vmem:[%s1 + $0xb8] sm:$0xff]
    %v188 = vld [vmem:[%s1 + $0xc0] sm:$0x1]
    %v189 = vld [vmem:[#allocation2] sm:$0xff]
    %v190 = vld [vmem:[#allocation2 + $0x8] sm:$0xff]
    %v191 = vld [vmem:[#allocation2 + $0x10] sm:$0xff]
    %v192 = vld [vmem:[#allocation2 + $0x18] sm:$0xff]
    %v193 = vld [vmem:[#allocation2 + $0x20] sm:$0xff]
    %v194 = vld [vmem:[#allocation2 + $0x28] sm:$0xff]
    %v195 = vld [vmem:[#allocation2 + $0x30] sm:$0xff]
    %v196 = vld [vmem:[#allocation2 + $0x38] sm:$0xff]
    %v197 = vmul.f32 %v189, 0.00390625
    %v198 = vmul.f32 %v190, 0.00390625
    %v199 = vmul.f32 %v191, 0.00390625
    %v200 = vmul.f32 %v192, 0.00390625
    %v201 = vmul.f32 %v193, 0.00390625
    %v202 = vmul.f32 %v194, 0.00390625
    %v203 = vmul.f32 %v195, 0.00390625
    %v204 = vmul.f32 %v196, 0.00390625
    %206 = vset.pattern.permute.xlu0 0
    %207 = vperm.xlu0 %206, %v197
    %v208 = vpop.permute.xlu0 %207
    %211 = vset.pattern.permute.xlu0 0
    %212 = vperm.xlu0 %211, %v198
    %v213 = vpop.permute.xlu0 %212
    %216 = vset.pattern.permute.xlu0 0
    %217 = vperm.xlu0 %216, %v199
    %v218 = vpop.permute.xlu0 %217
    %221 = vset.pattern.permute.xlu0 0
    %222 = vperm.xlu0 %221, %v200
    %v223 = vpop.permute.xlu0 %222
    %226 = vset.pattern.permute.xlu0 0
    %227 = vperm.xlu0 %226, %v201
    %v228 = vpop.permute.xlu0 %227
    %231 = vset.pattern.permute.xlu0 0
    %232 = vperm.xlu0 %231, %v202
    %v233 = vpop.permute.xlu0 %232
    %236 = vset.pattern.permute.xlu0 0
    %237 = vperm.xlu0 %236, %v203
    %v238 = vpop.permute.xlu0 %237
    %241 = vset.pattern.permute.xlu0 0
    %242 = vperm.xlu0 %241, %v204
    %v243 = vpop.permute.xlu0 %242
    %v245 = vmul.f32 %v164, %v208
    %v246 = vmul.f32 %v165, %v213
    %v247 = vmul.f32 %v166, %v218
    %v248 = vmul.f32 %v167, %v223
    %v249 = vmul.f32 %v168, %v228
    %v250 = vmul.f32 %v169, %v233
    %v251 = vmul.f32 %v170, %v238
    %v252 = vmul.f32 %v171, %v243
    %vm253 = vcmask 31744
    %v254 = vsel %vm253, %v245, 0.0
    %v255 = vsel %vm253, %v246, 0.0
    %v256 = vadd.f32 %v254, %v255
    %v257 = vsel %vm253, %v247, 0.0
    %v258 = vadd.f32 %v256, %v257
    %v259 = vsel %vm253, %v248, 0.0
    %v260 = vadd.f32 %v258, %v259
    %v261 = vsel %vm253, %v249, 0.0
    %v262 = vadd.f32 %v260, %v261
    %v263 = vsel %vm253, %v250, 0.0
    %v264 = vadd.f32 %v262, %v263
    %v265 = vsel %vm253, %v251, 0.0
    %v266 = vadd.f32 %v264, %v265
    %v267 = vsel %vm253, %v252, 0.0
    %v268 = vadd.f32 %v266, %v267
    %v269 = vrot.slane %v268, 4
    %v270 = vadd.f32 %v268, %v269
    %v271 = vrot.slane %v270, 2
    %v272 = vadd.f32 %v270, %v271
    %v273 = vrot.slane %v272, 1
    %v274 = vadd.f32 %v272, %v273
    %v275 = vadd.f32 %v274, %v188
    %v276 = vmax.f32 %v275, 0.0
    %v277 = vlaneseq
    %v278 = vshrl.u32 %v277, 7
    %v279 = vsub.s32 0, %v278
    %v280 = vrot.slane %v276, %v279
    %v281 = vmul.f32 %v172, %v280
    %v282 = vmul.f32 %v173, %v280
    %v283 = vmul.f32 %v174, %v280
    %v284 = vmul.f32 %v175, %v280
    %v285 = vmul.f32 %v176, %v280
    %v286 = vmul.f32 %v177, %v280
    %v287 = vmul.f32 %v178, %v280
    %v288 = vmul.f32 %v179, %v280
    %v289 = vsel %vm253, %v281, 0.0
    %290 = vadd.xlane.f32.xlu0 %v289
    %v291 = vpop.xlane.xlu0 %290
    %v292 = vsel %vm253, %v282, 0.0
    %293 = vadd.xlane.f32.xlu0 %v292
    %v294 = vpop.xlane.xlu0 %293
    %v295 = vsel %vm253, %v283, 0.0
    %296 = vadd.xlane.f32.xlu0 %v295
    %v297 = vpop.xlane.xlu0 %296
    %v298 = vsel %vm253, %v284, 0.0
    %299 = vadd.xlane.f32.xlu0 %v298
    %v300 = vpop.xlane.xlu0 %299
    %v301 = vsel %vm253, %v285, 0.0
    %302 = vadd.xlane.f32.xlu0 %v301
    %v303 = vpop.xlane.xlu0 %302
    %v304 = vsel %vm253, %v286, 0.0
    %305 = vadd.xlane.f32.xlu0 %v304
    %v306 = vpop.xlane.xlu0 %305
    %v307 = vsel %vm253, %v287, 0.0
    %308 = vadd.xlane.f32.xlu0 %v307
    %v309 = vpop.xlane.xlu0 %308
    %v310 = vsel %vm253, %v288, 0.0
    %311 = vadd.xlane.f32.xlu0 %v310
    %v312 = vpop.xlane.xlu0 %311
    %v313 = vadd.f32 %v291, %v180
    %v314 = vadd.f32 %v294, %v181
    %v315 = vadd.f32 %v297, %v182
    %v316 = vadd.f32 %v300, %v183
    %v317 = vadd.f32 %v303, %v184
    %v318 = vadd.f32 %v306, %v185
    %v319 = vadd.f32 %v309, %v186
    %v320 = vadd.f32 %v312, %v187
    %v321 = vand.u32 2147483647, %v313
    %v322 = vand.u32 2147483647, %v314
    %v323 = vand.u32 2147483647, %v315
    %v324 = vand.u32 2147483647, %v316
    %v325 = vand.u32 2147483647, %v317
    %v326 = vand.u32 2147483647, %v318
    %v327 = vand.u32 2147483647, %v319
    %v328 = vand.u32 2147483647, %v320
    %v329 = vsub.f32 0.0, %v321
    %v330 = vsub.f32 0.0, %v322
    %v331 = vsub.f32 0.0, %v323
    %v332 = vsub.f32 0.0, %v324
    %v333 = vsub.f32 0.0, %v325
    %v334 = vsub.f32 0.0, %v326
    %v335 = vsub.f32 0.0, %v327
    %v336 = vsub.f32 0.0, %v328
    %v337 = vmul.f32 %v329, 1.442695
    %v338 = vpow.pop %v337
    %v339 = vmul.f32 %v330, 1.442695
    %v340 = vpow.pop %v339
    %v341 = vmul.f32 %v331, 1.442695
    %v342 = vpow.pop %v341
    %v343 = vmul.f32 %v332, 1.442695
    %v344 = vpow.pop %v343
    %v345 = vmul.f32 %v333, 1.442695
    %v346 = vpow.pop %v345
    %v347 = vmul.f32 %v334, 1.442695
    %v348 = vpow.pop %v347
    %v349 = vmul.f32 %v335, 1.442695
    %v350 = vpow.pop %v349
    %v351 = vmul.f32 %v336, 1.442695
    %v352 = vpow.pop %v351
    %vm353 = vcmp.ge.f32.partialorder %v313, 0.0
    %vm354 = vcmp.ge.f32.partialorder %v314, 0.0
    %vm355 = vcmp.ge.f32.partialorder %v315, 0.0
    %vm356 = vcmp.ge.f32.partialorder %v316, 0.0
    %vm357 = vcmp.ge.f32.partialorder %v317, 0.0
    %vm358 = vcmp.ge.f32.partialorder %v318, 0.0
    %vm359 = vcmp.ge.f32.partialorder %v319, 0.0
    %vm360 = vcmp.ge.f32.partialorder %v320, 0.0
    %v361 = vadd.f32 %v338, 1.0
    %v362 = vadd.f32 %v340, 1.0
    %v363 = vadd.f32 %v342, 1.0
    %v364 = vadd.f32 %v344, 1.0
    %v365 = vadd.f32 %v346, 1.0
    %v366 = vadd.f32 %v348, 1.0
    %v367 = vadd.f32 %v350, 1.0
    %v368 = vadd.f32 %v352, 1.0
    %v369 = vrcp.pop %v361
    %v370 = vmul.f32 1.0, %v369
    %v371 = vrcp.pop %v362
    %v372 = vmul.f32 1.0, %v371
    %v373 = vrcp.pop %v363
    %v374 = vmul.f32 1.0, %v373
    %v375 = vrcp.pop %v364
    %v376 = vmul.f32 1.0, %v375
    %v377 = vrcp.pop %v365
    %v378 = vmul.f32 1.0, %v377
    %v379 = vrcp.pop %v366
    %v380 = vmul.f32 1.0, %v379
    %v381 = vrcp.pop %v367
    %v382 = vmul.f32 1.0, %v381
    %v383 = vrcp.pop %v368
    %v384 = vmul.f32 1.0, %v383
    %v385 = vmul.f32 %v338, %v369
    %v386 = vmul.f32 %v340, %v371
    %v387 = vmul.f32 %v342, %v373
    %v388 = vmul.f32 %v344, %v375
    %v389 = vmul.f32 %v346, %v377
    %v390 = vmul.f32 %v348, %v379
    %v391 = vmul.f32 %v350, %v381
    %v392 = vmul.f32 %v352, %v383
    %v393 = vsel %vm353, %v370, %v385
    %v394 = vsel %vm354, %v372, %v386
    %v395 = vsel %vm355, %v374, %v387
    %v396 = vsel %vm356, %v376, %v388
    %v397 = vsel %vm357, %v378, %v389
    %v398 = vsel %vm358, %v380, %v390
    %v399 = vsel %vm359, %v382, %v391
    %v400 = vsel %vm360, %v384, %v392
    %401 = vst.msk [vmem:[%s2] sm:$0xff] %vm144, %v393
    %402 = vst.msk [vmem:[%s2 + $0x8] sm:$0xff] %vm144, %v394
    %403 = vst.msk [vmem:[%s2 + $0x10] sm:$0xff] %vm144, %v395
    %404 = vst.msk [vmem:[%s2 + $0x18] sm:$0xff] %vm144, %v396
    %405 = vst.msk [vmem:[%s2 + $0x20] sm:$0xff] %vm144, %v397
    %406 = vst.msk [vmem:[%s2 + $0x28] sm:$0xff] %vm144, %v398
    %407 = vst.msk [vmem:[%s2 + $0x30] sm:$0xff] %vm144, %v399
    %408 = vst.msk [vmem:[%s2 + $0x38] sm:$0xff] %vm144, %v400
    %s409 = scalar_lea.vmem [#allocation2], 64
    %v410 = vld [vmem:[%s409] sm:$0xff]
    %v411 = vld [vmem:[%s409 + $0x8] sm:$0xff]
    %v412 = vld [vmem:[%s409 + $0x10] sm:$0xff]
    %v413 = vld [vmem:[%s409 + $0x18] sm:$0xff]
    %v414 = vld [vmem:[%s409 + $0x20] sm:$0xff]
    %v415 = vld [vmem:[%s409 + $0x28] sm:$0xff]
    %v416 = vld [vmem:[%s409 + $0x30] sm:$0xff]
    %v417 = vld [vmem:[%s409 + $0x38] sm:$0xff]
    %v418 = vmul.f32 %v410, 0.00390625
    %v419 = vmul.f32 %v411, 0.00390625
    %v420 = vmul.f32 %v412, 0.00390625
    %v421 = vmul.f32 %v413, 0.00390625
    %v422 = vmul.f32 %v414, 0.00390625
    %v423 = vmul.f32 %v415, 0.00390625
    %v424 = vmul.f32 %v416, 0.00390625
    %v425 = vmul.f32 %v417, 0.00390625
    %427 = vset.pattern.permute.xlu0 0
    %428 = vperm.xlu0 %427, %v418
    %v429 = vpop.permute.xlu0 %428
    %432 = vset.pattern.permute.xlu0 0
    %433 = vperm.xlu0 %432, %v419
    %v434 = vpop.permute.xlu0 %433
    %437 = vset.pattern.permute.xlu0 0
    %438 = vperm.xlu0 %437, %v420
    %v439 = vpop.permute.xlu0 %438
    %442 = vset.pattern.permute.xlu0 0
    %443 = vperm.xlu0 %442, %v421
    %v444 = vpop.permute.xlu0 %443
    %447 = vset.pattern.permute.xlu0 0
    %448 = vperm.xlu0 %447, %v422
    %v449 = vpop.permute.xlu0 %448
    %452 = vset.pattern.permute.xlu0 0
    %453 = vperm.xlu0 %452, %v423
    %v454 = vpop.permute.xlu0 %453
    %457 = vset.pattern.permute.xlu0 0
    %458 = vperm.xlu0 %457, %v424
    %v459 = vpop.permute.xlu0 %458
    %462 = vset.pattern.permute.xlu0 0
    %463 = vperm.xlu0 %462, %v425
    %v464 = vpop.permute.xlu0 %463
    %v466 = vmul.f32 %v164, %v429
    %v467 = vmul.f32 %v165, %v434
    %v468 = vmul.f32 %v166, %v439
    %v469 = vmul.f32 %v167, %v444
    %v470 = vmul.f32 %v168, %v449
    %v471 = vmul.f32 %v169, %v454
    %v472 = vmul.f32 %v170, %v459
    %v473 = vmul.f32 %v171, %v464
    %v474 = vsel %vm253, %v466, 0.0
    %v475 = vsel %vm253, %v467, 0.0
    %v476 = vadd.f32 %v474, %v475
    %v477 = vsel %vm253, %v468, 0.0
    %v478 = vadd.f32 %v476, %v477
    %v479 = vsel %vm253, %v469, 0.0
    %v480 = vadd.f32 %v478, %v479
    %v481 = vsel %vm253, %v470, 0.0
    %v482 = vadd.f32 %v480, %v481
    %v483 = vsel %vm253, %v471, 0.0
    %v484 = vadd.f32 %v482, %v483
    %v485 = vsel %vm253, %v472, 0.0
    %v486 = vadd.f32 %v484, %v485
    %v487 = vsel %vm253, %v473, 0.0
    %v488 = vadd.f32 %v486, %v487
    %v489 = vrot.slane %v488, 4
    %v490 = vadd.f32 %v488, %v489
    %v491 = vrot.slane %v490, 2
    %v492 = vadd.f32 %v490, %v491
    %v493 = vrot.slane %v492, 1
    %v494 = vadd.f32 %v492, %v493
    %v495 = vadd.f32 %v494, %v188
    %v496 = vmax.f32 %v495, 0.0
    %v497 = vlaneseq
    %v498 = vshrl.u32 %v497, 7
    %v499 = vsub.s32 0, %v498
    %v500 = vrot.slane %v496, %v499
    %v501 = vmul.f32 %v172, %v500
    %v502 = vmul.f32 %v173, %v500
    %v503 = vmul.f32 %v174, %v500
    %v504 = vmul.f32 %v175, %v500
    %v505 = vmul.f32 %v176, %v500
    %v506 = vmul.f32 %v177, %v500
    %v507 = vmul.f32 %v178, %v500
    %v508 = vmul.f32 %v179, %v500
    %v509 = vsel %vm253, %v501, 0.0
    %510 = vadd.xlane.f32.xlu0 %v509
    %v511 = vpop.xlane.xlu0 %510
    %v512 = vsel %vm253, %v502, 0.0
    %513 = vadd.xlane.f32.xlu0 %v512
    %v514 = vpop.xlane.xlu0 %513
    %v515 = vsel %vm253, %v503, 0.0
    %516 = vadd.xlane.f32.xlu0 %v515
    %v517 = vpop.xlane.xlu0 %516
    %v518 = vsel %vm253, %v504, 0.0
    %519 = vadd.xlane.f32.xlu0 %v518
    %v520 = vpop.xlane.xlu0 %519
    %v521 = vsel %vm253, %v505, 0.0
    %522 = vadd.xlane.f32.xlu0 %v521
    %v523 = vpop.xlane.xlu0 %522
    %v524 = vsel %vm253, %v506, 0.0
    %525 = vadd.xlane.f32.xlu0 %v524
    %v526 = vpop.xlane.xlu0 %525
    %v527 = vsel %vm253, %v507, 0.0
    %528 = vadd.xlane.f32.xlu0 %v527
    %v529 = vpop.xlane.xlu0 %528
    %v530 = vsel %vm253, %v508, 0.0
    %531 = vadd.xlane.f32.xlu0 %v530
    %v532 = vpop.xlane.xlu0 %531
    %v533 = vadd.f32 %v511, %v180
    %v534 = vadd.f32 %v514, %v181
    %v535 = vadd.f32 %v517, %v182
    %v536 = vadd.f32 %v520, %v183
    %v537 = vadd.f32 %v523, %v184
    %v538 = vadd.f32 %v526, %v185
    %v539 = vadd.f32 %v529, %v186
    %v540 = vadd.f32 %v532, %v187
    %v541 = vand.u32 2147483647, %v533
    %v542 = vand.u32 2147483647, %v534
    %v543 = vand.u32 2147483647, %v535
    %v544 = vand.u32 2147483647, %v536
    %v545 = vand.u32 2147483647, %v537
    %v546 = vand.u32 2147483647, %v538
    %v547 = vand.u32 2147483647, %v539
    %v548 = vand.u32 2147483647, %v540
    %v549 = vsub.f32 0.0, %v541
    %v550 = vsub.f32 0.0, %v542
    %v551 = vsub.f32 0.0, %v543
    %v552 = vsub.f32 0.0, %v544
    %v553 = vsub.f32 0.0, %v545
    %v554 = vsub.f32 0.0, %v546
    %v555 = vsub.f32 0.0, %v547
    %v556 = vsub.f32 0.0, %v548
    %v557 = vmul.f32 %v549, 1.442695
    %v558 = vpow.pop %v557
    %v559 = vmul.f32 %v550, 1.442695
    %v560 = vpow.pop %v559
    %v561 = vmul.f32 %v551, 1.442695
    %v562 = vpow.pop %v561
    %v563 = vmul.f32 %v552, 1.442695
    %v564 = vpow.pop %v563
    %v565 = vmul.f32 %v553, 1.442695
    %v566 = vpow.pop %v565
    %v567 = vmul.f32 %v554, 1.442695
    %v568 = vpow.pop %v567
    %v569 = vmul.f32 %v555, 1.442695
    %v570 = vpow.pop %v569
    %v571 = vmul.f32 %v556, 1.442695
    %v572 = vpow.pop %v571
    %vm573 = vcmp.ge.f32.partialorder %v533, 0.0
    %vm574 = vcmp.ge.f32.partialorder %v534, 0.0
    %vm575 = vcmp.ge.f32.partialorder %v535, 0.0
    %vm576 = vcmp.ge.f32.partialorder %v536, 0.0
    %vm577 = vcmp.ge.f32.partialorder %v537, 0.0
    %vm578 = vcmp.ge.f32.partialorder %v538, 0.0
    %vm579 = vcmp.ge.f32.partialorder %v539, 0.0
    %vm580 = vcmp.ge.f32.partialorder %v540, 0.0
    %v581 = vadd.f32 %v558, 1.0
    %v582 = vadd.f32 %v560, 1.0
    %v583 = vadd.f32 %v562, 1.0
    %v584 = vadd.f32 %v564, 1.0
    %v585 = vadd.f32 %v566, 1.0
    %v586 = vadd.f32 %v568, 1.0
    %v587 = vadd.f32 %v570, 1.0
    %v588 = vadd.f32 %v572, 1.0
    %v589 = vrcp.pop %v581
    %v590 = vmul.f32 1.0, %v589
    %v591 = vrcp.pop %v582
    %v592 = vmul.f32 1.0, %v591
    %v593 = vrcp.pop %v583
    %v594 = vmul.f32 1.0, %v593
    %v595 = vrcp.pop %v584
    %v596 = vmul.f32 1.0, %v595
    %v597 = vrcp.pop %v585
    %v598 = vmul.f32 1.0, %v597
    %v599 = vrcp.pop %v586
    %v600 = vmul.f32 1.0, %v599
    %v601 = vrcp.pop %v587
    %v602 = vmul.f32 1.0, %v601
    %v603 = vrcp.pop %v588
    %v604 = vmul.f32 1.0, %v603
    %v605 = vmul.f32 %v558, %v589
    %v606 = vmul.f32 %v560, %v591
    %v607 = vmul.f32 %v562, %v593
    %v608 = vmul.f32 %v564, %v595
    %v609 = vmul.f32 %v566, %v597
    %v610 = vmul.f32 %v568, %v599
    %v611 = vmul.f32 %v570, %v601
    %v612 = vmul.f32 %v572, %v603
    %v613 = vsel %vm573, %v590, %v605
    %v614 = vsel %vm574, %v592, %v606
    %v615 = vsel %vm575, %v594, %v607
    %v616 = vsel %vm576, %v596, %v608
    %v617 = vsel %vm577, %v598, %v609
    %v618 = vsel %vm578, %v600, %v610
    %v619 = vsel %vm579, %v602, %v611
    %v620 = vsel %vm580, %v604, %v612
    %s621 = scalar_lea.vmem %s2, 64
    %622 = vst.msk [vmem:[%s621] sm:$0xff] %vm144, %v613
    %623 = vst.msk [vmem:[%s621 + $0x8] sm:$0xff] %vm144, %v614
    %624 = vst.msk [vmem:[%s621 + $0x10] sm:$0xff] %vm144, %v615
    %625 = vst.msk [vmem:[%s621 + $0x18] sm:$0xff] %vm144, %v616
    %626 = vst.msk [vmem:[%s621 + $0x20] sm:$0xff] %vm144, %v617
    %627 = vst.msk [vmem:[%s621 + $0x28] sm:$0xff] %vm144, %v618
    %628 = vst.msk [vmem:[%s621 + $0x30] sm:$0xff] %vm144, %v619
    %629 = vst.msk [vmem:[%s621 + $0x38] sm:$0xff] %vm144, %v620
  $region17: #{ca_layer.1} parent=0 // pred_fallthru
    _
  // Predicated region
  $region18: #{ca_layer.1} parent=0 // pred_check
    _
  $region19: #{ca_layer.1} parent=0 // pred_check_branch
    %631 = sbr.rel (0) target = $region21
  $region20: #{ca_layer.1} parent=0 // pred_region
    _
  $region21: #{ca_layer.1} parent=0 // pred_fallthru
    _
  // Predicated region
  $region22: #{ca_layer.1} parent=0 // pred_check
    _
  $region23: #{ca_layer.1} parent=0 // pred_check_branch
    %633 = sbr.rel (0) target = $region25
  $region24: #{ca_layer.1} parent=0 // pred_region
    _
  $region25: #{ca_layer.1} parent=0 // pred_fallthru
    _

</llo_original>
